<compile_context>
chip_gen: v6e
topology: v6e:2x2x1
jax: 0.10.0
libtpu: 0.0.40
codegen_flags: <defaults>
</compile_context>

<pallas_src>
import jax
import jax.numpy as jnp
from jax.experimental import pallas as pl
from jax.experimental.pallas import tpu as pltpu


_LANES = 128          # lane width of a vreg
_FALLBACK_TILE_S = 512  # sublane tile: 512*128 f32 lanes ~= 1 MiB/block at C=4


def _pick_max_tile_s(c_in, itemsize=4):
    """Largest sublane tile s.t. double-buffered in+out blocks stay well inside
    the default scoped-VMEM limit on every chip generation (v7x has the least
    VMEM: 64 MiB physical / 32 MiB default scoped)."""
    try:
        vmem_bytes = int(pltpu.get_tpu_info().vmem_capacity_bytes)
    except Exception:
        vmem_bytes = 64 << 20  # assume the smallest (v7x per-TC) if unknown
    # Budget: in + out blocks, each double-buffered, f32 compute footprint.
    budget = min(vmem_bytes // 16, 4 << 20)
    bytes_per_sublane_row = c_in * _LANES * itemsize * 2 * 2  # (in+out) x 2 bufs
    tile_s = budget // max(bytes_per_sublane_row, 1)
    tile_s = int((tile_s // 8) * 8)
    return max(8, min(tile_s, _FALLBACK_TILE_S * 4))


def _gate_kernel(x_ref, w_ref, b_ref, o_ref):
    """Fused 1x1x1 Conv3d + sigmoid + gating multiply on one block.

    x_ref: (1, C_in, TILE_S, 128)  VMEM — spatial on (sublane, lane); each
                                   channel slab is a dense (TILE_S, 128) tile.
    w_ref: (C_out, C_in)           SMEM — conv weight, read as scalars.
    b_ref: (C_out,)                SMEM — conv bias.
    o_ref: (1, C_out, TILE_S, 128) VMEM — dense, unmasked full-slab stores.
    """
    c_out, c_in = w_ref.shape
    # Unrolled (trace-time) VPU MAC over channels; C is tiny so the MXU would
    # run a degenerate 4x4 contraction.
    for o in range(c_out):
        # Fold the bias into the first MAC; read/cast each channel slab on
        # demand so only (TILE_S, 128)-sized intermediates are live.
        z = x_ref[0, 0].astype(jnp.float32) * w_ref[o, 0] + b_ref[o]
        for c in range(1, c_in):
            z = z + x_ref[0, c].astype(jnp.float32) * w_ref[o, c]
        # sigmoid(z) = 1 / (1 + exp(-z)); exp and the approximate reciprocal
        # both go to the EUP slot, leaving the VALU for the MAC / gating mul.
        gate = pl.reciprocal(1.0 + jnp.exp(-z), approx=True)
        o_ref[0, o] = (gate * x_ref[0, o].astype(jnp.float32)).astype(o_ref.dtype)


@jax.jit
def anomaly_detection_forward(x_ncdhw, weight, bias):
    """x_ncdhw: (N, C, D, H, W); weight: (C_out, C_in); bias: (C_out,)."""
    n, c_in, d, h, w = x_ncdhw.shape
    c_out, c_in_w = weight.shape
    assert c_in_w == c_in, "weight shape must be (C_out, C_in)"
    assert c_out == c_in, "gating multiply requires output_channels == input_channels"

    l = d * h * w
    rows = -(-l // _LANES)                      # ceil(L / 128)

    max_tile_s = _pick_max_tile_s(c_in)
    if rows <= max_tile_s:
        tile_s = rows                           # block == full dim -> legal
        rows_padded = rows
    else:
        tile_s = max_tile_s                     # multiple of 8
        rows_padded = -(-rows // tile_s) * tile_s
    l_padded = rows_padded * _LANES
    num_tiles = rows_padded // tile_s

    # Free reshape (DHW already contiguous per channel); zero-pad L once so
    # every grid tile is a full-width dense slab (no masked stores, and the
    # padded positions stay finite: sigmoid(b) * 0 == 0, sliced off below).
    x3 = x_ncdhw.reshape(n, c_in, l)
    if l_padded != l:
        x3 = jnp.pad(x3, ((0, 0), (0, 0), (0, l_padded - l)))
    x4 = x3.reshape(n, c_in, rows_padded, _LANES)

    w_f32 = weight.astype(jnp.float32)          # (C_out, C_in) -> SMEM
    b_f32 = bias.astype(jnp.float32)            # (C_out,)      -> SMEM

    out4 = pl.pallas_call(
        _gate_kernel,
        out_shape=jax.ShapeDtypeStruct((n, c_out, rows_padded, _LANES), x4.dtype),
        grid_spec=pltpu.PrefetchScalarGridSpec(
            num_scalar_prefetch=0,
            grid=(n, num_tiles),
            in_specs=[
                # Spatial on (sublane, lane), channels on a leading axis.
                pl.BlockSpec((1, c_in, tile_s, _LANES), lambda b, j: (b, 0, j, 0)),
                # Tiny conv parameters resident in SMEM.
                pl.BlockSpec(memory_space=pltpu.MemorySpace.SMEM),
                pl.BlockSpec(memory_space=pltpu.MemorySpace.SMEM),
            ],
            out_specs=pl.BlockSpec((1, c_out, tile_s, _LANES),
                                   lambda b, j: (b, 0, j, 0)),
        ),
        compiler_params=pltpu.CompilerParams(
            dimension_semantics=("parallel", "parallel"),
        ),
    )(x4, w_f32, b_f32)

    out3 = out4.reshape(n, c_out, l_padded)
    if l_padded != l:
        out3 = out3[:, :, :l]
    return out3.reshape(n, c_out, d, h, w)


def _reference_forward(x_ncdhw, weight, bias):
    # Plain-JAX reference of Conv3d(kernel_size=1) -> sigmoid -> gate.
    logits = jnp.einsum("ncdhw,oc->nodhw", x_ncdhw.astype(jnp.float32),
                        weight.astype(jnp.float32))
    logits = logits + bias.reshape(1, -1, 1, 1, 1)
    return jax.nn.sigmoid(logits) * x_ncdhw.astype(jnp.float32)


if __name__ == "__main__":
    input_channels = 4
    output_channels = 4

    key = jax.random.PRNGKey(0)
    kx, kw, kb, kx2 = jax.random.split(key, 4)

    # Deterministic "Conv3d(kernel_size=1)" parameters, weight shape (C_out, C_in).
    weight = jax.random.normal(kw, (output_channels, input_channels),
                               dtype=jnp.float32) * 0.1
    bias = jax.random.normal(kb, (output_channels,), dtype=jnp.float32) * 0.1

    # Tolerance covers the EUP approximate-reciprocal in the sigmoid
    # (relative error ~1e-4 level); structural bugs would be O(0.1-1).
    atol = rtol = 5e-3

    # Case 1: aligned spatial extent (L = 256 = 2 * 128 lanes).
    N, D, H, W = 2, 4, 8, 8
    x = jax.random.normal(kx, (N, input_channels, D, H, W), dtype=jnp.float32)
    out = jax.block_until_ready(anomaly_detection_forward(x, weight, bias))
    ref = _reference_forward(x, weight, bias)
    assert out.shape == (N, output_channels, D, H, W)
    assert jnp.allclose(out, ref, atol=atol, rtol=rtol)

    # Case 2: ragged spatial extent (L = 105), exercises the zero-pad path.
    N2, D2, H2, W2 = 1, 3, 7, 5
    x2 = jax.random.normal(kx2, (N2, input_channels, D2, H2, W2),
                           dtype=jnp.float32)
    out2 = jax.block_until_ready(anomaly_detection_forward(x2, weight, bias))
    ref2 = _reference_forward(x2, weight, bias)
    assert out2.shape == (N2, output_channels, D2, H2, W2)
    assert jnp.allclose(out2, ref2, atol=atol, rtol=rtol)
    assert jnp.all(jnp.isfinite(out2))

    print("KERNEL_OK")
</pallas_src>

<mosaic_0001>
module attributes {stable_mosaic.version = 11 : i64} {
  func.func @_gate_kernel(%arg0: i32, %arg1: i32, %arg2: memref<1x4x2x128xf32, #tpu.memory_space<vmem>>, %arg3: memref<4x4xf32, #tpu.memory_space<smem>>, %arg4: memref<4xf32, #tpu.memory_space<smem>>, %arg5: memref<1x4x2x128xf32, #tpu.memory_space<vmem>>) attributes {dimension_semantics = [#tpu.dimension_semantics<parallel>, #tpu.dimension_semantics<parallel>], iteration_bounds = array<i64: 2, 1>, scalar_prefetch = 0 : i64, scratch_operands = 0 : i64, tpu.core_type = #tpu.core_type<tc>, window_params = [{transform_indices = @transform_0, window_bounds = array<i64: 1, 4, 2, 128>}, {transform_indices = @transform_1, window_bounds = array<i64: 4, 4>}, {transform_indices = @transform_2, window_bounds = array<i64: 4>}, {transform_indices = @transform_3, window_bounds = array<i64: 1, 4, 2, 128>}]} {
    %c0 = arith.constant 0 : index
    %c0_0 = arith.constant 0 : index
    %c0_1 = arith.constant 0 : index
    %c0_2 = arith.constant 0 : index
    %0 = vector.load %arg2[%c0, %c0_0, %c0_1, %c0_2] : memref<1x4x2x128xf32, #tpu.memory_space<vmem>>, vector<1x1x2x128xf32>
    %1 = vector.shape_cast %0 : vector<1x1x2x128xf32> to vector<2x128xf32>
    %c0_3 = arith.constant 0 : index
    %c0_4 = arith.constant 0 : index
    %2 = memref.load %arg3[%c0_3, %c0_4] : memref<4x4xf32, #tpu.memory_space<smem>>
    %3 = vector.broadcast %2 : f32 to vector<2x128xf32>
    %4 = arith.mulf %1, %3 : vector<2x128xf32>
    %c0_5 = arith.constant 0 : index
    %5 = memref.load %arg4[%c0_5] : memref<4xf32, #tpu.memory_space<smem>>
    %6 = vector.broadcast %5 : f32 to vector<2x128xf32>
    %7 = arith.addf %4, %6 : vector<2x128xf32>
    %c0_6 = arith.constant 0 : index
    %c1 = arith.constant 1 : index
    %c0_7 = arith.constant 0 : index
    %c0_8 = arith.constant 0 : index
    %8 = vector.load %arg2[%c0_6, %c1, %c0_7, %c0_8] : memref<1x4x2x128xf32, #tpu.memory_space<vmem>>, vector<1x1x2x128xf32>
    %9 = vector.shape_cast %8 : vector<1x1x2x128xf32> to vector<2x128xf32>
    %c0_9 = arith.constant 0 : index
    %c1_10 = arith.constant 1 : index
    %10 = memref.load %arg3[%c0_9, %c1_10] : memref<4x4xf32, #tpu.memory_space<smem>>
    %11 = vector.broadcast %10 : f32 to vector<2x128xf32>
    %12 = arith.mulf %9, %11 : vector<2x128xf32>
    %13 = arith.addf %7, %12 : vector<2x128xf32>
    %c0_11 = arith.constant 0 : index
    %c2 = arith.constant 2 : index
    %c0_12 = arith.constant 0 : index
    %c0_13 = arith.constant 0 : index
    %14 = vector.load %arg2[%c0_11, %c2, %c0_12, %c0_13] : memref<1x4x2x128xf32, #tpu.memory_space<vmem>>, vector<1x1x2x128xf32>
    %15 = vector.shape_cast %14 : vector<1x1x2x128xf32> to vector<2x128xf32>
    %c0_14 = arith.constant 0 : index
    %c2_15 = arith.constant 2 : index
    %16 = memref.load %arg3[%c0_14, %c2_15] : memref<4x4xf32, #tpu.memory_space<smem>>
    %17 = vector.broadcast %16 : f32 to vector<2x128xf32>
    %18 = arith.mulf %15, %17 : vector<2x128xf32>
    %19 = arith.addf %13, %18 : vector<2x128xf32>
    %c0_16 = arith.constant 0 : index
    %c3 = arith.constant 3 : index
    %c0_17 = arith.constant 0 : index
    %c0_18 = arith.constant 0 : index
    %20 = vector.load %arg2[%c0_16, %c3, %c0_17, %c0_18] : memref<1x4x2x128xf32, #tpu.memory_space<vmem>>, vector<1x1x2x128xf32>
    %21 = vector.shape_cast %20 : vector<1x1x2x128xf32> to vector<2x128xf32>
    %c0_19 = arith.constant 0 : index
    %c3_20 = arith.constant 3 : index
    %22 = memref.load %arg3[%c0_19, %c3_20] : memref<4x4xf32, #tpu.memory_space<smem>>
    %23 = vector.broadcast %22 : f32 to vector<2x128xf32>
    %24 = arith.mulf %21, %23 : vector<2x128xf32>
    %25 = arith.addf %19, %24 : vector<2x128xf32>
    %cst = arith.constant 0.000000e+00 : f32
    %26 = vector.broadcast %cst : f32 to vector<2x128xf32>
    %27 = arith.subf %26, %25 : vector<2x128xf32>
    %28 = math.exp %27 : vector<2x128xf32>
    %cst_21 = arith.constant 1.000000e+00 : f32
    %29 = vector.broadcast %cst_21 : f32 to vector<2x128xf32>
    %30 = arith.addf %29, %28 : vector<2x128xf32>
    %31 = tpu.reciprocal %30 {approx = true} : vector<2x128xf32> -> vector<2x128xf32>
    %c0_22 = arith.constant 0 : index
    %c0_23 = arith.constant 0 : index
    %c0_24 = arith.constant 0 : index
    %c0_25 = arith.constant 0 : index
    %32 = vector.load %arg2[%c0_22, %c0_23, %c0_24, %c0_25] : memref<1x4x2x128xf32, #tpu.memory_space<vmem>>, vector<1x1x2x128xf32>
    %33 = vector.shape_cast %32 : vector<1x1x2x128xf32> to vector<2x128xf32>
    %34 = arith.mulf %31, %33 : vector<2x128xf32>
    %c0_26 = arith.constant 0 : index
    %c0_27 = arith.constant 0 : index
    %c0_28 = arith.constant 0 : index
    %c0_29 = arith.constant 0 : index
    %35 = vector.load %arg5[%c0_26, %c0_27, %c0_28, %c0_29] : memref<1x4x2x128xf32, #tpu.memory_space<vmem>>, vector<1x1x2x128xf32>
    %36 = vector.shape_cast %35 : vector<1x1x2x128xf32> to vector<2x128xf32>
    %37 = vector.shape_cast %34 : vector<2x128xf32> to vector<1x1x2x128xf32>
    tpu.vector_store %arg5[%c0_26, %c0_27, %c0_28, %c0_29], %37 {strides = array<i32>} : memref<1x4x2x128xf32, #tpu.memory_space<vmem>>, vector<1x1x2x128xf32>,
    %c0_30 = arith.constant 0 : index
    %c0_31 = arith.constant 0 : index
    %c0_32 = arith.constant 0 : index
    %c0_33 = arith.constant 0 : index
    %38 = vector.load %arg2[%c0_30, %c0_31, %c0_32, %c0_33] : memref<1x4x2x128xf32, #tpu.memory_space<vmem>>, vector<1x1x2x128xf32>
    %39 = vector.shape_cast %38 : vector<1x1x2x128xf32> to vector<2x128xf32>
    %c1_34 = arith.constant 1 : index
    %c0_35 = arith.constant 0 : index
    %40 = memref.load %arg3[%c1_34, %c0_35] : memref<4x4xf32, #tpu.memory_space<smem>>
    %41 = vector.broadcast %40 : f32 to vector<2x128xf32>
    %42 = arith.mulf %39, %41 : vector<2x128xf32>
    %c1_36 = arith.constant 1 : index
    %43 = memref.load %arg4[%c1_36] : memref<4xf32, #tpu.memory_space<smem>>
    %44 = vector.broadcast %43 : f32 to vector<2x128xf32>
    %45 = arith.addf %42, %44 : vector<2x128xf32>
    %c0_37 = arith.constant 0 : index
    %c1_38 = arith.constant 1 : index
    %c0_39 = arith.constant 0 : index
    %c0_40 = arith.constant 0 : index
    %46 = vector.load %arg2[%c0_37, %c1_38, %c0_39, %c0_40] : memref<1x4x2x128xf32, #tpu.memory_space<vmem>>, vector<1x1x2x128xf32>
    %47 = vector.shape_cast %46 : vector<1x1x2x128xf32> to vector<2x128xf32>
    %c1_41 = arith.constant 1 : index
    %c1_42 = arith.constant 1 : index
    %48 = memref.load %arg3[%c1_41, %c1_42] : memref<4x4xf32, #tpu.memory_space<smem>>
    %49 = vector.broadcast %48 : f32 to vector<2x128xf32>
    %50 = arith.mulf %47, %49 : vector<2x128xf32>
    %51 = arith.addf %45, %50 : vector<2x128xf32>
    %c0_43 = arith.constant 0 : index
    %c2_44 = arith.constant 2 : index
    %c0_45 = arith.constant 0 : index
    %c0_46 = arith.constant 0 : index
    %52 = vector.load %arg2[%c0_43, %c2_44, %c0_45, %c0_46] : memref<1x4x2x128xf32, #tpu.memory_space<vmem>>, vector<1x1x2x128xf32>
    %53 = vector.shape_cast %52 : vector<1x1x2x128xf32> to vector<2x128xf32>
    %c1_47 = arith.constant 1 : index
    %c2_48 = arith.constant 2 : index
    %54 = memref.load %arg3[%c1_47, %c2_48] : memref<4x4xf32, #tpu.memory_space<smem>>
    %55 = vector.broadcast %54 : f32 to vector<2x128xf32>
    %56 = arith.mulf %53, %55 : vector<2x128xf32>
    %57 = arith.addf %51, %56 : vector<2x128xf32>
    %c0_49 = arith.constant 0 : index
    %c3_50 = arith.constant 3 : index
    %c0_51 = arith.constant 0 : index
    %c0_52 = arith.constant 0 : index
    %58 = vector.load %arg2[%c0_49, %c3_50, %c0_51, %c0_52] : memref<1x4x2x128xf32, #tpu.memory_space<vmem>>, vector<1x1x2x128xf32>
    %59 = vector.shape_cast %58 : vector<1x1x2x128xf32> to vector<2x128xf32>
    %c1_53 = arith.constant 1 : index
    %c3_54 = arith.constant 3 : index
    %60 = memref.load %arg3[%c1_53, %c3_54] : memref<4x4xf32, #tpu.memory_space<smem>>
    %61 = vector.broadcast %60 : f32 to vector<2x128xf32>
    %62 = arith.mulf %59, %61 : vector<2x128xf32>
    %63 = arith.addf %57, %62 : vector<2x128xf32>
    %cst_55 = arith.constant 0.000000e+00 : f32
    %64 = vector.broadcast %cst_55 : f32 to vector<2x128xf32>
    %65 = arith.subf %64, %63 : vector<2x128xf32>
    %66 = math.exp %65 : vector<2x128xf32>
    %cst_56 = arith.constant 1.000000e+00 : f32
    %67 = vector.broadcast %cst_56 : f32 to vector<2x128xf32>
    %68 = arith.addf %67, %66 : vector<2x128xf32>
    %69 = tpu.reciprocal %68 {approx = true} : vector<2x128xf32> -> vector<2x128xf32>
    %c0_57 = arith.constant 0 : index
    %c1_58 = arith.constant 1 : index
    %c0_59 = arith.constant 0 : index
    %c0_60 = arith.constant 0 : index
    %70 = vector.load %arg2[%c0_57, %c1_58, %c0_59, %c0_60] : memref<1x4x2x128xf32, #tpu.memory_space<vmem>>, vector<1x1x2x128xf32>
    %71 = vector.shape_cast %70 : vector<1x1x2x128xf32> to vector<2x128xf32>
    %72 = arith.mulf %69, %71 : vector<2x128xf32>
    %c0_61 = arith.constant 0 : index
    %c1_62 = arith.constant 1 : index
    %c0_63 = arith.constant 0 : index
    %c0_64 = arith.constant 0 : index
    %73 = vector.load %arg5[%c0_61, %c1_62, %c0_63, %c0_64] : memref<1x4x2x128xf32, #tpu.memory_space<vmem>>, vector<1x1x2x128xf32>
    %74 = vector.shape_cast %73 : vector<1x1x2x128xf32> to vector<2x128xf32>
    %75 = vector.shape_cast %72 : vector<2x128xf32> to vector<1x1x2x128xf32>
    tpu.vector_store %arg5[%c0_61, %c1_62, %c0_63, %c0_64], %75 {strides = array<i32>} : memref<1x4x2x128xf32, #tpu.memory_space<vmem>>, vector<1x1x2x128xf32>,
    %c0_65 = arith.constant 0 : index
    %c0_66 = arith.constant 0 : index
    %c0_67 = arith.constant 0 : index
    %c0_68 = arith.constant 0 : index
    %76 = vector.load %arg2[%c0_65, %c0_66, %c0_67, %c0_68] : memref<1x4x2x128xf32, #tpu.memory_space<vmem>>, vector<1x1x2x128xf32>
    %77 = vector.shape_cast %76 : vector<1x1x2x128xf32> to vector<2x128xf32>
    %c2_69 = arith.constant 2 : index
    %c0_70 = arith.constant 0 : index
    %78 = memref.load %arg3[%c2_69, %c0_70] : memref<4x4xf32, #tpu.memory_space<smem>>
    %79 = vector.broadcast %78 : f32 to vector<2x128xf32>
    %80 = arith.mulf %77, %79 : vector<2x128xf32>
    %c2_71 = arith.constant 2 : index
    %81 = memref.load %arg4[%c2_71] : memref<4xf32, #tpu.memory_space<smem>>
    %82 = vector.broadcast %81 : f32 to vector<2x128xf32>
    %83 = arith.addf %80, %82 : vector<2x128xf32>
    %c0_72 = arith.constant 0 : index
    %c1_73 = arith.constant 1 : index
    %c0_74 = arith.constant 0 : index
    %c0_75 = arith.constant 0 : index
    %84 = vector.load %arg2[%c0_72, %c1_73, %c0_74, %c0_75] : memref<1x4x2x128xf32, #tpu.memory_space<vmem>>, vector<1x1x2x128xf32>
    %85 = vector.shape_cast %84 : vector<1x1x2x128xf32> to vector<2x128xf32>
    %c2_76 = arith.constant 2 : index
    %c1_77 = arith.constant 1 : index
    %86 = memref.load %arg3[%c2_76, %c1_77] : memref<4x4xf32, #tpu.memory_space<smem>>
    %87 = vector.broadcast %86 : f32 to vector<2x128xf32>
    %88 = arith.mulf %85, %87 : vector<2x128xf32>
    %89 = arith.addf %83, %88 : vector<2x128xf32>
    %c0_78 = arith.constant 0 : index
    %c2_79 = arith.constant 2 : index
    %c0_80 = arith.constant 0 : index
    %c0_81 = arith.constant 0 : index
    %90 = vector.load %arg2[%c0_78, %c2_79, %c0_80, %c0_81] : memref<1x4x2x128xf32, #tpu.memory_space<vmem>>, vector<1x1x2x128xf32>
    %91 = vector.shape_cast %90 : vector<1x1x2x128xf32> to vector<2x128xf32>
    %c2_82 = arith.constant 2 : index
    %c2_83 = arith.constant 2 : index
    %92 = memref.load %arg3[%c2_82, %c2_83] : memref<4x4xf32, #tpu.memory_space<smem>>
    %93 = vector.broadcast %92 : f32 to vector<2x128xf32>
    %94 = arith.mulf %91, %93 : vector<2x128xf32>
    %95 = arith.addf %89, %94 : vector<2x128xf32>
    %c0_84 = arith.constant 0 : index
    %c3_85 = arith.constant 3 : index
    %c0_86 = arith.constant 0 : index
    %c0_87 = arith.constant 0 : index
    %96 = vector.load %arg2[%c0_84, %c3_85, %c0_86, %c0_87] : memref<1x4x2x128xf32, #tpu.memory_space<vmem>>, vector<1x1x2x128xf32>
    %97 = vector.shape_cast %96 : vector<1x1x2x128xf32> to vector<2x128xf32>
    %c2_88 = arith.constant 2 : index
    %c3_89 = arith.constant 3 : index
    %98 = memref.load %arg3[%c2_88, %c3_89] : memref<4x4xf32, #tpu.memory_space<smem>>
    %99 = vector.broadcast %98 : f32 to vector<2x128xf32>
    %100 = arith.mulf %97, %99 : vector<2x128xf32>
    %101 = arith.addf %95, %100 : vector<2x128xf32>
    %cst_90 = arith.constant 0.000000e+00 : f32
    %102 = vector.broadcast %cst_90 : f32 to vector<2x128xf32>
    %103 = arith.subf %102, %101 : vector<2x128xf32>
    %104 = math.exp %103 : vector<2x128xf32>
    %cst_91 = arith.constant 1.000000e+00 : f32
    %105 = vector.broadcast %cst_91 : f32 to vector<2x128xf32>
    %106 = arith.addf %105, %104 : vector<2x128xf32>
    %107 = tpu.reciprocal %106 {approx = true} : vector<2x128xf32> -> vector<2x128xf32>
    %c0_92 = arith.constant 0 : index
    %c2_93 = arith.constant 2 : index
    %c0_94 = arith.constant 0 : index
    %c0_95 = arith.constant 0 : index
    %108 = vector.load %arg2[%c0_92, %c2_93, %c0_94, %c0_95] : memref<1x4x2x128xf32, #tpu.memory_space<vmem>>, vector<1x1x2x128xf32>
    %109 = vector.shape_cast %108 : vector<1x1x2x128xf32> to vector<2x128xf32>
    %110 = arith.mulf %107, %109 : vector<2x128xf32>
    %c0_96 = arith.constant 0 : index
    %c2_97 = arith.constant 2 : index
    %c0_98 = arith.constant 0 : index
    %c0_99 = arith.constant 0 : index
    %111 = vector.load %arg5[%c0_96, %c2_97, %c0_98, %c0_99] : memref<1x4x2x128xf32, #tpu.memory_space<vmem>>, vector<1x1x2x128xf32>
    %112 = vector.shape_cast %111 : vector<1x1x2x128xf32> to vector<2x128xf32>
    %113 = vector.shape_cast %110 : vector<2x128xf32> to vector<1x1x2x128xf32>
    tpu.vector_store %arg5[%c0_96, %c2_97, %c0_98, %c0_99], %113 {strides = array<i32>} : memref<1x4x2x128xf32, #tpu.memory_space<vmem>>, vector<1x1x2x128xf32>,
    %c0_100 = arith.constant 0 : index
    %c0_101 = arith.constant 0 : index
    %c0_102 = arith.constant 0 : index
    %c0_103 = arith.constant 0 : index
    %114 = vector.load %arg2[%c0_100, %c0_101, %c0_102, %c0_103] : memref<1x4x2x128xf32, #tpu.memory_space<vmem>>, vector<1x1x2x128xf32>
    %115 = vector.shape_cast %114 : vector<1x1x2x128xf32> to vector<2x128xf32>
    %c3_104 = arith.constant 3 : index
    %c0_105 = arith.constant 0 : index
    %116 = memref.load %arg3[%c3_104, %c0_105] : memref<4x4xf32, #tpu.memory_space<smem>>
    %117 = vector.broadcast %116 : f32 to vector<2x128xf32>
    %118 = arith.mulf %115, %117 : vector<2x128xf32>
    %c3_106 = arith.constant 3 : index
    %119 = memref.load %arg4[%c3_106] : memref<4xf32, #tpu.memory_space<smem>>
    %120 = vector.broadcast %119 : f32 to vector<2x128xf32>
    %121 = arith.addf %118, %120 : vector<2x128xf32>
    %c0_107 = arith.constant 0 : index
    %c1_108 = arith.constant 1 : index
    %c0_109 = arith.constant 0 : index
    %c0_110 = arith.constant 0 : index
    %122 = vector.load %arg2[%c0_107, %c1_108, %c0_109, %c0_110] : memref<1x4x2x128xf32, #tpu.memory_space<vmem>>, vector<1x1x2x128xf32>
    %123 = vector.shape_cast %122 : vector<1x1x2x128xf32> to vector<2x128xf32>
    %c3_111 = arith.constant 3 : index
    %c1_112 = arith.constant 1 : index
    %124 = memref.load %arg3[%c3_111, %c1_112] : memref<4x4xf32, #tpu.memory_space<smem>>
    %125 = vector.broadcast %124 : f32 to vector<2x128xf32>
    %126 = arith.mulf %123, %125 : vector<2x128xf32>
    %127 = arith.addf %121, %126 : vector<2x128xf32>
    %c0_113 = arith.constant 0 : index
    %c2_114 = arith.constant 2 : index
    %c0_115 = arith.constant 0 : index
    %c0_116 = arith.constant 0 : index
    %128 = vector.load %arg2[%c0_113, %c2_114, %c0_115, %c0_116] : memref<1x4x2x128xf32, #tpu.memory_space<vmem>>, vector<1x1x2x128xf32>
    %129 = vector.shape_cast %128 : vector<1x1x2x128xf32> to vector<2x128xf32>
    %c3_117 = arith.constant 3 : index
    %c2_118 = arith.constant 2 : index
    %130 = memref.load %arg3[%c3_117, %c2_118] : memref<4x4xf32, #tpu.memory_space<smem>>
    %131 = vector.broadcast %130 : f32 to vector<2x128xf32>
    %132 = arith.mulf %129, %131 : vector<2x128xf32>
    %133 = arith.addf %127, %132 : vector<2x128xf32>
    %c0_119 = arith.constant 0 : index
    %c3_120 = arith.constant 3 : index
    %c0_121 = arith.constant 0 : index
    %c0_122 = arith.constant 0 : index
    %134 = vector.load %arg2[%c0_119, %c3_120, %c0_121, %c0_122] : memref<1x4x2x128xf32, #tpu.memory_space<vmem>>, vector<1x1x2x128xf32>
    %135 = vector.shape_cast %134 : vector<1x1x2x128xf32> to vector<2x128xf32>
    %c3_123 = arith.constant 3 : index
    %c3_124 = arith.constant 3 : index
    %136 = memref.load %arg3[%c3_123, %c3_124] : memref<4x4xf32, #tpu.memory_space<smem>>
    %137 = vector.broadcast %136 : f32 to vector<2x128xf32>
    %138 = arith.mulf %135, %137 : vector<2x128xf32>
    %139 = arith.addf %133, %138 : vector<2x128xf32>
    %cst_125 = arith.constant 0.000000e+00 : f32
    %140 = vector.broadcast %cst_125 : f32 to vector<2x128xf32>
    %141 = arith.subf %140, %139 : vector<2x128xf32>
    %142 = math.exp %141 : vector<2x128xf32>
    %cst_126 = arith.constant 1.000000e+00 : f32
    %143 = vector.broadcast %cst_126 : f32 to vector<2x128xf32>
    %144 = arith.addf %143, %142 : vector<2x128xf32>
    %145 = tpu.reciprocal %144 {approx = true} : vector<2x128xf32> -> vector<2x128xf32>
    %c0_127 = arith.constant 0 : index
    %c3_128 = arith.constant 3 : index
    %c0_129 = arith.constant 0 : index
    %c0_130 = arith.constant 0 : index
    %146 = vector.load %arg2[%c0_127, %c3_128, %c0_129, %c0_130] : memref<1x4x2x128xf32, #tpu.memory_space<vmem>>, vector<1x1x2x128xf32>
    %147 = vector.shape_cast %146 : vector<1x1x2x128xf32> to vector<2x128xf32>
    %148 = arith.mulf %145, %147 : vector<2x128xf32>
    %c0_131 = arith.constant 0 : index
    %c3_132 = arith.constant 3 : index
    %c0_133 = arith.constant 0 : index
    %c0_134 = arith.constant 0 : index
    %149 = vector.load %arg5[%c0_131, %c3_132, %c0_133, %c0_134] : memref<1x4x2x128xf32, #tpu.memory_space<vmem>>, vector<1x1x2x128xf32>
    %150 = vector.shape_cast %149 : vector<1x1x2x128xf32> to vector<2x128xf32>
    %151 = vector.shape_cast %148 : vector<2x128xf32> to vector<1x1x2x128xf32>
    tpu.vector_store %arg5[%c0_131, %c3_132, %c0_133, %c0_134], %151 {strides = array<i32>} : memref<1x4x2x128xf32, #tpu.memory_space<vmem>>, vector<1x1x2x128xf32>,
    return
  }
  func.func @transform_0(%arg0: i32, %arg1: i32) -> (i32, i32, i32, i32) {
    %c0_i32 = arith.constant 0 : i32
    %c0_i32_0 = arith.constant 0 : i32
    %c0_i32_1 = arith.constant 0 : i32
    return %arg0, %c0_i32, %arg1, %c0_i32_0 : i32, i32, i32, i32
  }
  func.func @transform_1(%arg0: i32, %arg1: i32) -> (i32, i32) {
    %c0_i32 = arith.constant 0 : i32
    %c0_i32_0 = arith.constant 0 : i32
    %c0_i32_1 = arith.constant 0 : i32
    return %c0_i32, %c0_i32_0 : i32, i32
  }
  func.func @transform_2(%arg0: i32, %arg1: i32) -> i32 {
    %c0_i32 = arith.constant 0 : i32
    %c0_i32_0 = arith.constant 0 : i32
    return %c0_i32 : i32
  }
  func.func @transform_3(%arg0: i32, %arg1: i32) -> (i32, i32, i32, i32) {
    %c0_i32 = arith.constant 0 : i32
    %c0_i32_0 = arith.constant 0 : i32
    %c0_i32_1 = arith.constant 0 : i32
    return %arg0, %c0_i32, %arg1, %c0_i32_0 : i32, i32, i32, i32
  }
}

</mosaic_0001>

<llo_original>
// kernel: anomaly_detection_forward.1
$region0: #{anomaly_detection_forward.1}
  #allocation0 [shape = 'u32[]', space=smem, size = 0x4, offset = 0x4, fixed_abs, tag = 'smem constant byte address 0x4 - core index']
  #allocation1 [shape = 'u32[144,128]{1,0:T(1,128)}', space=vmem, size = 0x12000, scoped, tag = 'internal scratch']
  %s0 = inlined_call_operand.vmem [shape: f32[2,4,2,128], index: 0, kind: input, shape index: {}]
  %s1 = inlined_call_operand.vmem [shape: f32[4,4], index: 1, kind: input, shape index: {}]
  %s2 = inlined_call_operand.vmem [shape: f32[4], index: 2, kind: input, shape index: {}]
  %s3 = inlined_call_operand.vmem [shape: f32[2,4,2,128], index: 3, kind: output, shape index: {}]
  %s4 = sld [smem:[#allocation0]]
  $region53: #{anomaly_detection_forward.1} parent=0
    _
  %s6 = ssub.s32 1, %s4
  %s7 = scalar_select 0, %s6, %s4
  $region1: #{anomaly_detection_forward.1} parent=0
    #allocation2 [shape = 'u8[2048]{0}', space=smem, size = 0x800, scoped, tag = 'input window, operand 1, single buffered']
    #allocation3 [shape = 's32[2]{0}', space=sflag, size = 0x8, scoped, tag = 'scoped memory for anomaly_detection_forward.1']
    #allocation4 [shape = 'u8[512]{0}', space=smem, size = 0x200, scoped, tag = 'input window, operand 2, single buffered']
    #allocation5 [shape = 's32[1]{0}', space=sflag, size = 0x4, scoped, tag = 'scoped memory for anomaly_detection_forward.1']
    %8 = vsyncpa [#allocation3], 0
    %9 = vsyncpa [#allocation5], 0
    loop: start=0, step=1, limit=4
    $region2: #{anomaly_detection_forward.1} parent=1 // loop_pre_header
      _
    $region3: #{anomaly_detection_forward.1} parent=1 // loop_header
      %s11 = sphi 0, %s15
      %p12 = scmp.ge.s32.totalorder %s11, 4
      %s18 = sphi 0, %s30
      %s19 = sphi 0, %s26
      %s20 = sphi 0, %s18
      %s21 = sphi 0, %s19
      %s22 = sphi 0, %s20
      %s23 = sphi 0, %s21
      %s35 = sphi 0, %s37
      %s38 = sphi 0, %s35
      %s39 = sphi 0, %s38
      %s55 = sphi 0, %s39
      %s59 = sphi 0, %s59
      %s61 = sphi 0, %s59
      %s62 = sphi 0, %s61
      %s76 = sphi 0, %s62
      %s80 = sphi 0, %s80
      %s82 = sphi 0, %s80
      %s83 = sphi 0, %s82
      %s97 = sphi 0, %s83
      %s105 = sphi 0, %s107
      %s108 = sphi 0, %s105
      %s109 = sphi 0, %s108
      %s125 = sphi 0, %s109
    $region4: #{anomaly_detection_forward.1} parent=1 // loop_header_branch
      %14 = sbr.rel (%p12) target = $region8
    $region5: #{anomaly_detection_forward.1} parent=1 // loop_body
      %s16 = ssub.s32 %s11, 1
      %s17 = ssub.s32 %s11, 2
      %s24 = sadd.s32 1, %s19
      %p25 = scmp.ge.s32.totalorder %s24, 1
      %s26 = scalar_select %p25, 0, %s24
      %s27 = sadd.s32 1, %s18
      %s28 = scalar_select %p25, %s27, %s18
      %p29 = scmp.ge.s32.totalorder %s28, 2
      %s30 = scalar_select %p29, 0, %s28
      %s31 = ssub.s32 %s18, %s30
      %s32 = ssub.s32 %s19, %s26
      %s33 = sor.u32 %s31, %s32
      %p34 = scmp.eq.s32.totalorder %s33, 0
      %s36 = sadd.s32 %s35, 1
      %s37 = scalar_select %p34, %s35, %s36
      %p40 = pneg %p34
      %p41 = scmp.eq.s32.totalorder %s11, 1
      %p42 = por %p40, %p41
      %p43 = scmp.ne.s32.totalorder %s35, %s38
      %p44 = scmp.eq.s32.totalorder %s11, 0
      %p45 = por %p43, %p44
      %p46 = scmp.ne.s32.totalorder %s35, %s38
      %p47 = scmp.eq.s32.totalorder %s16, 1
      %p48 = por %p46, %p47
      %p49 = scmp.ne.s32.totalorder %s38, %s39
      %p50 = scmp.eq.s32.totalorder %s16, 0
      %p51 = por %p49, %p50
      %p52 = scmp.ne.s32.totalorder %s38, %s39
      %p53 = scmp.eq.s32.totalorder %s17, 1
      %p54 = por %p52, %p53
      %p56 = scmp.ne.s32.totalorder %s39, %s55
      %p57 = scmp.eq.s32.totalorder %s17, 0
      %p58 = por %p56, %p57
      %s60 = sadd.s32 %s59, 1
      %p63 = scmp.eq.s32.totalorder %s11, 1
      %p64 = scmp.ne.s32.totalorder %s59, %s61
      %p65 = scmp.eq.s32.totalorder %s11, 0
      %p66 = por %p64, %p65
      %p67 = scmp.ne.s32.totalorder %s59, %s61
      %p68 = scmp.eq.s32.totalorder %s16, 1
      %p69 = por %p67, %p68
      %p70 = scmp.ne.s32.totalorder %s61, %s62
      %p71 = scmp.eq.s32.totalorder %s16, 0
      %p72 = por %p70, %p71
      %p73 = scmp.ne.s32.totalorder %s61, %s62
      %p74 = scmp.eq.s32.totalorder %s17, 1
      %p75 = por %p73, %p74
      %p77 = scmp.ne.s32.totalorder %s62, %s76
      %p78 = scmp.eq.s32.totalorder %s17, 0
      %p79 = por %p77, %p78
      %s81 = sadd.s32 %s80, 1
      %p84 = scmp.eq.s32.totalorder %s11, 1
      %p85 = scmp.ne.s32.totalorder %s80, %s82
      %p86 = scmp.eq.s32.totalorder %s11, 0
      %p87 = por %p85, %p86
      %p88 = scmp.ne.s32.totalorder %s80, %s82
      %p89 = scmp.eq.s32.totalorder %s16, 1
      %p90 = por %p88, %p89
      %p91 = scmp.ne.s32.totalorder %s82, %s83
      %p92 = scmp.eq.s32.totalorder %s16, 0
      %p93 = por %p91, %p92
      %p94 = scmp.ne.s32.totalorder %s82, %s83
      %p95 = scmp.eq.s32.totalorder %s17, 1
      %p96 = por %p94, %p95
      %p98 = scmp.ne.s32.totalorder %s83, %s97
      %p99 = scmp.eq.s32.totalorder %s17, 0
      %p100 = por %p98, %p99
      %s101 = ssub.s32 %s18, %s30
      %s102 = ssub.s32 %s19, %s26
      %s103 = sor.u32 %s101, %s102
      %p104 = scmp.eq.s32.totalorder %s103, 0
      %s106 = sadd.s32 %s105, 1
      %s107 = scalar_select %p104, %s105, %s106
      %p110 = pneg %p104
      %p111 = scmp.eq.s32.totalorder %s11, 1
      %p112 = por %p110, %p111
      %p113 = scmp.ne.s32.totalorder %s105, %s108
      %p114 = scmp.eq.s32.totalorder %s11, 0
      %p115 = por %p113, %p114
      %p116 = scmp.ne.s32.totalorder %s105, %s108
      %p117 = scmp.eq.s32.totalorder %s16, 1
      %p118 = por %p116, %p117
      %p119 = scmp.ne.s32.totalorder %s108, %s109
      %p120 = scmp.eq.s32.totalorder %s16, 0
      %p121 = por %p119, %p120
      %p122 = scmp.ne.s32.totalorder %s108, %s109
      %p123 = scmp.eq.s32.totalorder %s17, 1
      %p124 = por %p122, %p123
      %p126 = scmp.ne.s32.totalorder %s109, %s125
      %p127 = scmp.eq.s32.totalorder %s17, 0
      %p128 = por %p126, %p127
      %p129 = scmp.le.s32.totalorder 1, %s11
      %p130 = scmp.lt.s32.totalorder %s11, 3
      %p131 = pnand %p129, %p130
      %p132 = pneg %p131
      // Predicated region
      $region9: #{anomaly_detection_forward.1} parent=5 // pred_check
        _
      $region10: #{anomaly_detection_forward.1} parent=5 // pred_check_branch
        %134 = sbr.rel (%p131) target = $region12
      $region11: #{anomaly_detection_forward.1} parent=5 // pred_region
        %s135 = ssub.s32 %s11, 1
        // Predicated region
        $region13: #{anomaly_detection_forward.1} parent=11 // pred_check
          %p136 = pneg %p72
        $region14: #{anomaly_detection_forward.1} parent=11 // pred_check_branch
          %138 = sbr.rel (%p136) target = $region16
        $region15: #{anomaly_detection_forward.1} parent=11 // pred_region
          %s140 = ssub.s32 64, 64
          %141 = vsyncadd [#allocation3], %s140
          %s143 = sshll.u32 %s1, 4
          %s144 = int_to_ptr.vmem [resolvable:$true] %s143
          %146 = dma.vmem_to_smem %s144, 64, [#allocation2], [#allocation3]
        $region16: #{anomaly_detection_forward.1} parent=11 // pred_fallthru
          _
        // Predicated region
        $region17: #{anomaly_detection_forward.1} parent=11 // pred_check
          %p147 = pneg %p93
        $region18: #{anomaly_detection_forward.1} parent=11 // pred_check_branch
          %149 = sbr.rel (%p147) target = $region20
        $region19: #{anomaly_detection_forward.1} parent=11 // pred_region
          %s151 = ssub.s32 16, 16
          %152 = vsyncadd [#allocation5], %s151
          %s154 = sshll.u32 %s2, 4
          %s155 = int_to_ptr.vmem [resolvable:$true] %s154
          %157 = dma.vmem_to_smem %s155, 16, [#allocation4], [#allocation5]
        $region20: #{anomaly_detection_forward.1} parent=11 // pred_fallthru
          _
      $region12: #{anomaly_detection_forward.1} parent=5 // pred_fallthru
        _
      %p158 = scmp.lt.s32.totalorder %s11, 2
      // Predicated region
      $region21: #{anomaly_detection_forward.1} parent=5 // pred_check
        %p159 = pneg %p158
      $region22: #{anomaly_detection_forward.1} parent=5 // pred_check_branch
        %161 = sbr.rel (%p159) target = $region24
      $region23: #{anomaly_detection_forward.1} parent=5 // pred_region
        // Predicated region
        $region25: #{anomaly_detection_forward.1} parent=23 // pred_check
          %p162 = pneg %p45
        $region26: #{anomaly_detection_forward.1} parent=23 // pred_check_branch
          %164 = sbr.rel (%p162) target = $region28
        $region27: #{anomaly_detection_forward.1} parent=23 // pred_region
          %p165 = scmp.lt.s32.totalorder %s18, 1
          %s166 = scalar_select %p165, %s18, 1
          %p167 = scmp.lt.s32.totalorder %s19, 0
          %s168 = scalar_select %p167, %s19, 0
          %s169 = smul.addr %s166, 4
          %s170 = sadd.s32 %s168, %s169
          %s171 = smul.addr %s170, 2
          %s172 = scalar_lea.vmem %s0, %s171
        $region28: #{anomaly_detection_forward.1} parent=23 // pred_fallthru
          _
      $region24: #{anomaly_detection_forward.1} parent=5 // pred_fallthru
        _
      %p173 = scmp.le.s32.totalorder 1, %s11
      %p174 = scmp.lt.s32.totalorder %s11, 3
      %p175 = pnand %p173, %p174
      %p176 = pneg %p175
      // Predicated region
      $region29: #{anomaly_detection_forward.1} parent=5 // pred_check
        _
      $region30: #{anomaly_detection_forward.1} parent=5 // pred_check_branch
        %178 = sbr.rel (%p175) target = $region32
      $region31: #{anomaly_detection_forward.1} parent=5 // pred_region
        %s179 = ssub.s32 %s11, 1
        // Predicated region
        $region33: #{anomaly_detection_forward.1} parent=31 // pred_check
          %p180 = pneg %p72
        $region34: #{anomaly_detection_forward.1} parent=31 // pred_check_branch
          %182 = sbr.rel (%p180) target = $region36
        $region35: #{anomaly_detection_forward.1} parent=31 // pred_region
          %183 = dma.done [#allocation3], 64
        $region36: #{anomaly_detection_forward.1} parent=31 // pred_fallthru
          _
        // Predicated region
        $region37: #{anomaly_detection_forward.1} parent=31 // pred_check
          %p184 = pneg %p93
        $region38: #{anomaly_detection_forward.1} parent=31 // pred_check_branch
          %186 = sbr.rel (%p184) target = $region40
        $region39: #{anomaly_detection_forward.1} parent=31 // pred_region
          %187 = dma.done [#allocation5], 16
        $region40: #{anomaly_detection_forward.1} parent=31 // pred_fallthru
          _
        %188 = sfence
        %p189 = scmp.lt.s32.totalorder %s20, 1
        %s190 = scalar_select %p189, %s20, 1
        %p191 = scmp.lt.s32.totalorder %s21, 0
        %s192 = scalar_select %p191, %s21, 0
        %s193 = smul.addr %s190, 4
        %s194 = sadd.s32 %s192, %s193
        %s195 = smul.addr %s194, 2
        %s196 = scalar_lea.vmem %s0, %s195
        %p197 = pneg %p51
        %p198 = pneg %p48
        %p199 = pneg %p72
        %p200 = pneg %p69
        %p201 = pneg %p93
        %p202 = pneg %p90
        %p203 = pneg %p121
        %p204 = pneg %p118
        %p205 = scmp.lt.s32.totalorder %s20, 1
        %s206 = scalar_select %p205, %s20, 1
        %p207 = scmp.lt.s32.totalorder %s21, 0
        %s208 = scalar_select %p207, %s21, 0
        %s209 = smul.addr %s206, 4
        %s210 = sadd.s32 %s208, %s209
        %s211 = smul.addr %s210, 2
        %s212 = scalar_lea.vmem %s3, %s211
        %p213 = scmp.lt.s32.totalorder %s20, 1
        %s214 = scalar_select %p213, %s20, 1
        %p215 = scmp.lt.s32.totalorder %s21, 0
        %s216 = scalar_select %p215, %s21, 0
        %s217 = smul.addr %s214, 4
        %s218 = sadd.s32 %s216, %s217
        %s219 = smul.addr %s218, 2
        %s220 = scalar_lea.vmem %s0, %s219
        %p221 = scmp.lt.s32.totalorder %s20, 1
        %s222 = scalar_select %p221, %s20, 1
        %p223 = scmp.lt.s32.totalorder %s21, 0
        %s224 = scalar_select %p223, %s21, 0
        %s225 = smul.addr %s222, 4
        %s226 = sadd.s32 %s224, %s225
        %s227 = smul.addr %s226, 2
        %s228 = scalar_lea.vmem %s3, %s227
        %v229 = vld [vmem:[%s220] sm:$0x3]
        %s230 = sld [smem:[#allocation2]]
        %v231 = vstv %s230
        %v232 = vmul.f32 %v229, %v231
        %s233 = sld [smem:[#allocation4]]
        %v234 = vstv %s233
        %v235 = vadd.f32 %v232, %v234
        %s236 = scalar_lea.vmem %s220, 2
        %v237 = vld [vmem:[%s236] sm:$0x3]
        %s238 = sld [smem:[#allocation2 + $0x1]]
        %v239 = vstv %s238
        %v240 = vmul.f32 %v237, %v239
        %v241 = vadd.f32 %v235, %v240
        %s242 = scalar_lea.vmem %s220, 4
        %v243 = vld [vmem:[%s242] sm:$0x3]
        %s244 = sld [smem:[#allocation2 + $0x2]]
        %v245 = vstv %s244
        %v246 = vmul.f32 %v243, %v245
        %v247 = vadd.f32 %v241, %v246
        %s248 = scalar_lea.vmem %s220, 6
        %v249 = vld [vmem:[%s248] sm:$0x3]
        %s250 = sld [smem:[#allocation2 + $0x3]]
        %v251 = vstv %s250
        %v252 = vmul.f32 %v249, %v251
        %v253 = vadd.f32 %v247, %v252
        %v254 = vsub.f32 0.0, %v253
        %v255 = vmul.f32 %v254, 1.442695
        %v256 = vpow.pop %v255
        %v257 = vadd.f32 %v256, 1.0
        %v258 = vrcp.pop %v257
        %v259 = vmul.f32 %v258, %v229
        %260 = vst [vmem:[%s228] sm:$0x3] %v259
        %v261 = vld [vmem:[%s220] sm:$0x3]
        %s262 = sld [smem:[#allocation2 + $0x80]]
        %v263 = vstv %s262
        %v264 = vmul.f32 %v261, %v263
        %s265 = sld [smem:[#allocation4 + $0x1]]
        %v266 = vstv %s265
        %v267 = vadd.f32 %v264, %v266
        %v268 = vld [vmem:[%s236] sm:$0x3]
        %s269 = sld [smem:[#allocation2 + $0x81]]
        %v270 = vstv %s269
        %v271 = vmul.f32 %v268, %v270
        %v272 = vadd.f32 %v267, %v271
        %v273 = vld [vmem:[%s242] sm:$0x3]
        %s274 = sld [smem:[#allocation2 + $0x82]]
        %v275 = vstv %s274
        %v276 = vmul.f32 %v273, %v275
        %v277 = vadd.f32 %v272, %v276
        %v278 = vld [vmem:[%s248] sm:$0x3]
        %s279 = sld [smem:[#allocation2 + $0x83]]
        %v280 = vstv %s279
        %v281 = vmul.f32 %v278, %v280
        %v282 = vadd.f32 %v277, %v281
        %v283 = vsub.f32 0.0, %v282
        %v284 = vmul.f32 %v283, 1.442695
        %v285 = vpow.pop %v284
        %v286 = vadd.f32 %v285, 1.0
        %v287 = vrcp.pop %v286
        %v288 = vmul.f32 %v287, %v268
        %s289 = scalar_lea.vmem %s228, 2
        %290 = vst [vmem:[%s289] sm:$0x3] %v288
        %v291 = vld [vmem:[%s220] sm:$0x3]
        %s292 = sld [smem:[#allocation2 + $0x100]]
        %v293 = vstv %s292
        %v294 = vmul.f32 %v291, %v293
        %s295 = sld [smem:[#allocation4 + $0x2]]
        %v296 = vstv %s295
        %v297 = vadd.f32 %v294, %v296
        %v298 = vld [vmem:[%s236] sm:$0x3]
        %s299 = sld [smem:[#allocation2 + $0x101]]
        %v300 = vstv %s299
        %v301 = vmul.f32 %v298, %v300
        %v302 = vadd.f32 %v297, %v301
        %v303 = vld [vmem:[%s242] sm:$0x3]
        %s304 = sld [smem:[#allocation2 + $0x102]]
        %v305 = vstv %s304
        %v306 = vmul.f32 %v303, %v305
        %v307 = vadd.f32 %v302, %v306
        %v308 = vld [vmem:[%s248] sm:$0x3]
        %s309 = sld [smem:[#allocation2 + $0x103]]
        %v310 = vstv %s309
        %v311 = vmul.f32 %v308, %v310
        %v312 = vadd.f32 %v307, %v311
        %v313 = vsub.f32 0.0, %v312
        %v314 = vmul.f32 %v313, 1.442695
        %v315 = vpow.pop %v314
        %v316 = vadd.f32 %v315, 1.0
        %v317 = vrcp.pop %v316
        %v318 = vmul.f32 %v317, %v303
        %s319 = scalar_lea.vmem %s228, 4
        %320 = vst [vmem:[%s319] sm:$0x3] %v318
        %v321 = vld [vmem:[%s220] sm:$0x3]
        %s322 = sld [smem:[#allocation2 + $0x180]]
        %v323 = vstv %s322
        %v324 = vmul.f32 %v321, %v323
        %s325 = sld [smem:[#allocation4 + $0x3]]
        %v326 = vstv %s325
        %v327 = vadd.f32 %v324, %v326
        %v328 = vld [vmem:[%s236] sm:$0x3]
        %s329 = sld [smem:[#allocation2 + $0x181]]
        %v330 = vstv %s329
        %v331 = vmul.f32 %v328, %v330
        %v332 = vadd.f32 %v327, %v331
        %v333 = vld [vmem:[%s242] sm:$0x3]
        %s334 = sld [smem:[#allocation2 + $0x182]]
        %v335 = vstv %s334
        %v336 = vmul.f32 %v333, %v335
        %v337 = vadd.f32 %v332, %v336
        %v338 = vld [vmem:[%s248] sm:$0x3]
        %s339 = sld [smem:[#allocation2 + $0x183]]
        %v340 = vstv %s339
        %v341 = vmul.f32 %v338, %v340
        %v342 = vadd.f32 %v337, %v341
        %v343 = vsub.f32 0.0, %v342
        %v344 = vmul.f32 %v343, 1.442695
        %v345 = vpow.pop %v344
        %v346 = vadd.f32 %v345, 1.0
        %v347 = vrcp.pop %v346
        %v348 = vmul.f32 %v347, %v338
        %s349 = scalar_lea.vmem %s228, 6
        %350 = vst [vmem:[%s349] sm:$0x3] %v348
        %p351 = scmp.lt.s32.totalorder %s20, 1
        %s352 = scalar_select %p351, %s20, 1
        %p353 = scmp.lt.s32.totalorder %s21, 0
        %s354 = scalar_select %p353, %s21, 0
        %s355 = smul.addr %s352, 4
        %s356 = sadd.s32 %s354, %s355
        %s357 = smul.addr %s356, 2
        %s358 = scalar_lea.vmem %s3, %s357
        // Predicated region
        $region41: #{anomaly_detection_forward.1} parent=31 // pred_check
          %p359 = pneg %p118
        $region42: #{anomaly_detection_forward.1} parent=31 // pred_check_branch
          %361 = sbr.rel (%p359) target = $region44
        $region43: #{anomaly_detection_forward.1} parent=31 // pred_region
          _
        $region44: #{anomaly_detection_forward.1} parent=31 // pred_fallthru
          _
      $region32: #{anomaly_detection_forward.1} parent=5 // pred_fallthru
        _
      %p362 = scmp.le.s32.totalorder 2, %s11
      // Predicated region
      $region45: #{anomaly_detection_forward.1} parent=5 // pred_check
        %p363 = pneg %p362
      $region46: #{anomaly_detection_forward.1} parent=5 // pred_check_branch
        %365 = sbr.rel (%p363) target = $region48
      $region47: #{anomaly_detection_forward.1} parent=5 // pred_region
        %s366 = ssub.s32 %s11, 2
        // Predicated region
        $region49: #{anomaly_detection_forward.1} parent=47 // pred_check
          %p367 = pneg %p124
        $region50: #{anomaly_detection_forward.1} parent=47 // pred_check_branch
          %369 = sbr.rel (%p367) target = $region52
        $region51: #{anomaly_detection_forward.1} parent=47 // pred_region
          %p370 = scmp.lt.s32.totalorder %s22, 1
          %s371 = scalar_select %p370, %s22, 1
          %p372 = scmp.lt.s32.totalorder %s23, 0
          %s373 = scalar_select %p372, %s23, 0
          %s374 = smul.addr %s371, 4
          %s375 = sadd.s32 %s373, %s374
          %s376 = smul.addr %s375, 2
          %s377 = scalar_lea.vmem %s3, %s376
        $region52: #{anomaly_detection_forward.1} parent=47 // pred_fallthru
          _
      $region48: #{anomaly_detection_forward.1} parent=5 // pred_fallthru
        _
    $region6: #{anomaly_detection_forward.1} parent=1 // loop_footer
      %s15 = sadd.s32 1, %s11
    $region7: #{anomaly_detection_forward.1} parent=1 // loop_footer_branch
      %10 = sbr.rel target = $region3
    $region8: #{anomaly_detection_forward.1} parent=1 // loop_exit
      _
    %378 = vsyncpa [#allocation3], 1
    %s379 = scalar_lea.sflag [#allocation3], 1
    %380 = vsyncpa %s379, 1
    %381 = vsyncpa [#allocation5], 1

</llo_original>
